<compile_context>
chip_gen: v7x
topology: tpu7x:2x2x1
jax: 0.10.0
libtpu: 0.0.40
codegen_flags: <defaults>
</compile_context>

<pallas_src>
import jax
import jax.numpy as jnp
from jax.experimental import pallas as pl
from jax.experimental.pallas import tpu as pltpu

_LANES = 128                       # vreg lane width
_TARGET_BLOCK_BYTES = 2 * 1024 * 1024  # per array per grid step (~12 MiB total
                                       # with 3 arrays x 2 buffers -> safe on v5e)


def _avg_kernel(a_ref, b_ref, o_ref):
    # Pure VPU elementwise on a lane-dense tile. Dtype promotion is done here
    # (in-register) instead of as a separate HBM-materializing astype.
    a = a_ref[...].astype(o_ref.dtype)
    b = b_ref[...].astype(o_ref.dtype)
    o_ref[...] = (a + b) * 0.5


def _sublane_multiple(dtype):
    # Sub-32-bit dtypes pack along sublanes: 8 rows for 4-byte, 16 for 2-byte,
    # 32 for 1-byte elements.
    return {4: 8, 2: 16, 1: 32}.get(jnp.dtype(dtype).itemsize, 8)


def _pick_width(n):
    # Widest lane-dense last dim that divides n exactly (no padding needed).
    for w in (1024, 512, 256, 128):
        if n % w == 0:
            return w
    return None


def _avg_2d(a2, b2, out_dtype):
    """Average two [rows, width] lane-dense slabs with a 1-D parallel grid."""
    rows, width = a2.shape
    itemsize = jnp.dtype(out_dtype).itemsize
    sub = _sublane_multiple(out_dtype)

    # ~2 MiB per array per step, rounded down to a sublane multiple.
    tile_rows = max(sub, (_TARGET_BLOCK_BYTES // (width * itemsize)) // sub * sub)

    # Keep at least 2 grid steps when the problem allows it, so the "parallel"
    # grid axis can shard across both TensorCores on v7x.
    if rows > tile_rows:
        half = max(sub, (((rows + 1) // 2) // sub) * sub)
        tile_rows = min(tile_rows, half)
    if tile_rows >= rows:
        tile_rows = rows  # single full-extent block (always a legal block dim)

    grid = (pl.cdiv(rows, tile_rows),)

    cost = pl.CostEstimate(
        flops=2 * rows * width,
        transcendentals=0,
        bytes_accessed=(a2.size * a2.dtype.itemsize
                        + b2.size * b2.dtype.itemsize
                        + rows * width * itemsize),
    )

    return pl.pallas_call(
        _avg_kernel,
        out_shape=jax.ShapeDtypeStruct((rows, width), out_dtype),
        grid=grid,
        in_specs=[
            pl.BlockSpec((tile_rows, width), lambda i: (i, 0)),
            pl.BlockSpec((tile_rows, width), lambda i: (i, 0)),
        ],
        out_specs=pl.BlockSpec((tile_rows, width), lambda i: (i, 0)),
        compiler_params=pltpu.CompilerParams(
            dimension_semantics=("parallel",),
        ),
        cost_estimate=cost,
    )(a2, b2)


def bottleneck_forward(pic_in_1, pic_in_2):
    """(pic_in_1 + pic_in_2) / 2, elementwise, arbitrary (static) shape."""
    assert pic_in_1.shape == pic_in_2.shape, (pic_in_1.shape, pic_in_2.shape)
    orig_shape = pic_in_1.shape

    out_dtype = jnp.result_type(pic_in_1.dtype, pic_in_2.dtype)
    if not jnp.issubdtype(out_dtype, jnp.floating):
        out_dtype = jnp.float32  # match torch's true division for int inputs

    n = pic_in_1.size
    width = _pick_width(n)

    if width is not None:
        # Fast path (typical NCHW tensors): contiguous reshape only, no copies.
        rows = n // width
        out = _avg_2d(pic_in_1.reshape(rows, width),
                      pic_in_2.reshape(rows, width),
                      out_dtype)
        return out.reshape(orig_shape)

    # Rare ragged path: element count is not a multiple of 128 lanes.
    # Pad once to the lane boundary, run the same kernel, slice the tail off.
    a = pic_in_1.reshape(-1)
    b = pic_in_2.reshape(-1)
    rows = pl.cdiv(n, _LANES)
    n_pad = rows * _LANES
    a2 = jnp.pad(a, (0, n_pad - n)).reshape(rows, _LANES)
    b2 = jnp.pad(b, (0, n_pad - n)).reshape(rows, _LANES)
    out = _avg_2d(a2, b2, out_dtype)
    return out.reshape(-1)[:n].reshape(orig_shape)


if __name__ == "__main__":
    key = jax.random.PRNGKey(0)
    k1, k2 = jax.random.split(key)

    # Small shapes consistent with the module's forward (two same-shaped inputs).
    shape = (2, 4, 16, 16)
    x1 = jax.random.normal(k1, shape, jnp.float32)
    x2 = jax.random.normal(k2, shape, jnp.float32)

    fwd = jax.jit(bottleneck_forward)
    out = fwd(x1, x2)
    jax.block_until_ready(out)

    # Reference check.
    ref = (x1 + x2) / 2
    assert out.shape == shape, out.shape
    assert out.dtype == ref.dtype, (out.dtype, ref.dtype)
    assert jnp.allclose(out, ref, atol=1e-6, rtol=1e-6)

    print("KERNEL_OK")
</pallas_src>

<mosaic_0001>
module attributes {stable_mosaic.version = 11 : i64} {
  func.func @_avg_kernel(%arg0: i32, %arg1: memref<2x1024xf32, #tpu.memory_space<vmem>>, %arg2: memref<2x1024xf32, #tpu.memory_space<vmem>>, %arg3: memref<2x1024xf32, #tpu.memory_space<vmem>>) attributes {dimension_semantics = [#tpu.dimension_semantics<parallel>], iteration_bounds = array<i64: 1>, scalar_prefetch = 0 : i64, scratch_operands = 0 : i64, tpu.core_type = #tpu.core_type<tc>, window_params = [{transform_indices = @transform_0, window_bounds = array<i64: 2, 1024>}, {transform_indices = @transform_1, window_bounds = array<i64: 2, 1024>}, {transform_indices = @transform_2, window_bounds = array<i64: 2, 1024>}]} {
    %c0 = arith.constant 0 : index
    %c0_0 = arith.constant 0 : index
    %0 = vector.load %arg1[%c0, %c0_0] : memref<2x1024xf32, #tpu.memory_space<vmem>>, vector<2x1024xf32>
    %c0_1 = arith.constant 0 : index
    %c0_2 = arith.constant 0 : index
    %1 = vector.load %arg2[%c0_1, %c0_2] : memref<2x1024xf32, #tpu.memory_space<vmem>>, vector<2x1024xf32>
    %2 = arith.addf %0, %1 : vector<2x1024xf32>
    %cst = arith.constant 5.000000e-01 : f32
    %3 = vector.broadcast %cst : f32 to vector<2x1024xf32>
    %4 = arith.mulf %2, %3 : vector<2x1024xf32>
    %c0_3 = arith.constant 0 : index
    %c0_4 = arith.constant 0 : index
    %5 = vector.load %arg3[%c0_3, %c0_4] : memref<2x1024xf32, #tpu.memory_space<vmem>>, vector<2x1024xf32>
    tpu.vector_store %arg3[%c0_3, %c0_4], %4 {strides = array<i32>} : memref<2x1024xf32, #tpu.memory_space<vmem>>, vector<2x1024xf32>,
    return
  }
  func.func @transform_0(%arg0: i32) -> (i32, i32) {
    %c0_i32 = arith.constant 0 : i32
    %c0_i32_0 = arith.constant 0 : i32
    return %arg0, %c0_i32 : i32, i32
  }
  func.func @transform_1(%arg0: i32) -> (i32, i32) {
    %c0_i32 = arith.constant 0 : i32
    %c0_i32_0 = arith.constant 0 : i32
    return %arg0, %c0_i32 : i32, i32
  }
  func.func @transform_2(%arg0: i32) -> (i32, i32) {
    %c0_i32 = arith.constant 0 : i32
    %c0_i32_0 = arith.constant 0 : i32
    return %arg0, %c0_i32 : i32, i32
  }
}

</mosaic_0001>

<llo_original>
// kernel: bottleneck_forward.1
$region0: #{bottleneck_forward.1}
  #allocation0 [shape = 'u32[]', space=smem, size = 0x4, offset = 0x4, fixed_abs, tag = 'smem constant byte address 0x4 - core index']
  #allocation1 [shape = 'u32[144,128]{1,0:T(1,128)}', space=vmem, size = 0x12000, scoped, tag = 'internal scratch']
  %s0 = inlined_call_operand.vmem [shape: f32[2,1024], index: 0, kind: input, shape index: {}]
  %s1 = inlined_call_operand.vmem [shape: f32[2,1024], index: 1, kind: input, shape index: {}]
  %s2 = inlined_call_operand.vmem [shape: f32[2,1024], index: 2, kind: output, shape index: {}]
  %s3 = sld [smem:[#allocation0]]
  $region18: #{bottleneck_forward.1} parent=0
    _
  %s5 = ssub.s32 1, %s3
  %s6 = scalar_select 0, %s5, %s3
  // Predicated region
  $region2: #{bottleneck_forward.1} parent=0 // pred_check
    _
  $region3: #{bottleneck_forward.1} parent=0 // pred_check_branch
    %8 = sbr.rel (0) target = $region5
  $region4: #{bottleneck_forward.1} parent=0 // pred_region
    _
  $region5: #{bottleneck_forward.1} parent=0 // pred_fallthru
    _
  // Predicated region
  $region6: #{bottleneck_forward.1} parent=0 // pred_check
    _
  $region7: #{bottleneck_forward.1} parent=0 // pred_check_branch
    %10 = sbr.rel (0) target = $region9
  $region8: #{bottleneck_forward.1} parent=0 // pred_region
    _
  $region9: #{bottleneck_forward.1} parent=0 // pred_fallthru
    _
  %v11 = vld [vmem:[%s0] sm:$0xff]
  %v12 = vld [vmem:[%s0 + $0x8] sm:$0xff]
  %v13 = vld [vmem:[%s1] sm:$0xff]
  %v14 = vld [vmem:[%s1 + $0x8] sm:$0xff]
  %v15 = vadd.f32 %v11, %v13
  %v16 = vadd.f32 %v12, %v14
  %v17 = vmul.f32 %v15, 0.5
  %v18 = vmul.f32 %v16, 0.5
  %19 = vst [vmem:[%s2] sm:$0xff] %v17
  %20 = vst [vmem:[%s2 + $0x8] sm:$0xff] %v18
  // Predicated region
  $region10: #{bottleneck_forward.1} parent=0 // pred_check
    _
  $region11: #{bottleneck_forward.1} parent=0 // pred_check_branch
    %22 = sbr.rel (0) target = $region13
  $region12: #{bottleneck_forward.1} parent=0 // pred_region
    _
  $region13: #{bottleneck_forward.1} parent=0 // pred_fallthru
    _
  // Predicated region
  $region14: #{bottleneck_forward.1} parent=0 // pred_check
    _
  $region15: #{bottleneck_forward.1} parent=0 // pred_check_branch
    %24 = sbr.rel (0) target = $region17
  $region16: #{bottleneck_forward.1} parent=0 // pred_region
    _
  $region17: #{bottleneck_forward.1} parent=0 // pred_fallthru
    _

</llo_original>
